<compile_context>
chip_gen: v6e
topology: v6e:2x2x1
jax: 0.10.0
libtpu: 0.0.40
codegen_flags: <defaults>
</compile_context>

<pallas_src>
import jax
import jax.numpy as jnp
from jax import lax
from jax.experimental import pallas as pl
from jax.experimental.pallas import tpu as pltpu

S, D = 5, 25   # seq length, feature dim (Linear(25, 25), inputs (1, 5, 25))


def _attn_kernel(c_ref, q_ref, k_ref, v_ref, wp_ref, out_ref):
    # Packed params slab (built once at init):
    #   rows [0:D]  = wv.T     (input-major weight for V = v @ wv.T + bv)
    #   row  D      = bv
    #   row  D+1    = a_q      (wq/qw fold, includes the 1/25 scale)
    #   row  D+2    = a_k      (wk/kw fold, includes the 1/25 scale)
    wvT = wp_ref[:D, :]                          # (D, D)
    bv  = wp_ref[D:D + 1, :]                     # (1, D)
    a_q = wp_ref[D + 1:D + 2, :]                 # (1, D)
    a_k = wp_ref[D + 2:D + 3, :]                 # (1, D)

    # Per-token scalar logits (VPU multiply + XLU lane-reduce, one per stream).
    qw = jnp.sum(q_ref[...] * a_q, axis=-1, keepdims=True) + c_ref[0]   # (S, 1)
    kw = jnp.sum(k_ref[...] * a_k, axis=-1, keepdims=True) + c_ref[1]   # (S, 1)

    # Logit outer product: K=1 dot on the MXU, qk[i, j] = qw[i] * kw[j].
    # The scalar attn_mask is dropped: a constant added to every logit of a row is a
    # softmax(dim=1) no-op.
    # TODO(synk): re-add the mask here if a real (S, S) additive mask is ever supplied.
    qk = lax.dot_general(qw, kw, (((1,), (1,)), ((), ())),
                         preferred_element_type=jnp.float32)            # (S, S)

    # Row softmax (dim=1); exact divide — perf-neutral on a single partially-filled vreg.
    m = jnp.max(qk, axis=1, keepdims=True)
    e = jnp.exp(qk - m)
    attn = e / jnp.sum(e, axis=1, keepdims=True)

    # V projection + output (two tiny MXU pushes, intentionally not blocked).
    V = jnp.dot(v_ref[...], wvT, preferred_element_type=jnp.float32) + bv   # (S, D)
    out_ref[...] = jnp.dot(attn, V, preferred_element_type=jnp.float32)


def precompute_packed_params(params):
    """Init-time parameter folding + packing (run once per parameter set).

    qw_i = <qw_p, wq @ q_i + bq> / 25 = q_i . a_q + c_q   (and likewise for k).
    Returns (consts (2,), wparams (D+3, D)) ready to feed straight into pallas_call.
    """
    qw_p = params["qw_p"].reshape(D).astype(jnp.float32)
    kw_p = params["kw_p"].reshape(D).astype(jnp.float32)
    a_q = (params["wq_w"].T @ qw_p) / 25.0                        # (D,)
    c_q = jnp.dot(params["wq_b"].reshape(D), qw_p) / 25.0         # scalar
    a_k = (params["wk_w"].T @ kw_p) / 25.0
    c_k = jnp.dot(params["wk_b"].reshape(D), kw_p) / 25.0

    wparams = jnp.concatenate(
        [params["wv_w"].T.astype(jnp.float32),          # rows [0:D]
         params["wv_b"].reshape(1, D).astype(jnp.float32),  # row D
         a_q.reshape(1, D).astype(jnp.float32),             # row D+1
         a_k.reshape(1, D).astype(jnp.float32)], axis=0)    # row D+2 -> (D+3, D)
    consts = jnp.stack([c_q, c_k]).astype(jnp.float32)      # (2,)
    return consts, wparams


@jax.jit
def model_forward(q, k, v, attn_mask, consts, wparams):
    """q, k, v: (1, S, D) float32.  consts/wparams from precompute_packed_params.

    Returns (1, S, D) float32.
    """
    del attn_mask  # scalar mask is a softmax(dim=1) no-op (see kernel note)

    q2 = q.reshape(S, D).astype(jnp.float32)
    k2 = k.reshape(S, D).astype(jnp.float32)
    v2 = v.reshape(S, D).astype(jnp.float32)

    vmem = pl.BlockSpec(memory_space=pltpu.MemorySpace.VMEM)
    smem = pl.BlockSpec(memory_space=pltpu.MemorySpace.SMEM)

    # B=1 here, so no grid.  If a real batch existed it would become grid=(B,) with
    # dimension_semantics=("parallel",) (shards across v7x's two TensorCores) and a
    # lane-dense packed output slab.
    out = pl.pallas_call(
        _attn_kernel,
        out_shape=jax.ShapeDtypeStruct((S, D), jnp.float32),
        in_specs=[smem, vmem, vmem, vmem, vmem],
        out_specs=vmem,
    )(consts, q2, k2, v2, wparams)
    return out.reshape(1, S, D)


def _reference(q, k, v, attn_mask, params):
    """Plain-JAX reference for the original (unfused) math."""
    Q = q.reshape(S, D) @ params["wq_w"].T + params["wq_b"].reshape(1, D)
    K = k.reshape(S, D) @ params["wk_w"].T + params["wk_b"].reshape(1, D)
    V = v.reshape(S, D) @ params["wv_w"].T + params["wv_b"].reshape(1, D)
    qw = Q @ params["qw_p"].reshape(D, 1)        # (S, 1)
    kw = K @ params["kw_p"].reshape(D, 1)        # (S, 1)
    qk = (qw / 25.0) @ (kw / 25.0).T + attn_mask
    attn = jax.nn.softmax(qk, axis=1)
    return (attn @ V).reshape(1, S, D)


if __name__ == "__main__":
    key = jax.random.PRNGKey(0)
    ks = jax.random.split(key, 11)

    q = jax.random.normal(ks[0], (1, S, D), jnp.float32)
    k = jax.random.normal(ks[1], (1, S, D), jnp.float32)
    v = jax.random.normal(ks[2], (1, S, D), jnp.float32)
    attn_mask = 1.0  # matches `attn_mask = 1` in the source script

    bound = 1.0 / (D ** 0.5)  # PyTorch Linear default init range

    def lin_init(kw_, kb_):
        w = jax.random.uniform(kw_, (D, D), jnp.float32, -bound, bound)  # (out, in)
        b = jax.random.uniform(kb_, (D,), jnp.float32, -bound, bound)
        return w, b

    wq_w, wq_b = lin_init(ks[3], ks[4])
    wk_w, wk_b = lin_init(ks[5], ks[6])
    wv_w, wv_b = lin_init(ks[7], ks[8])

    # The module initializes qw/kw parameters to zeros (uniform attention).  To actually
    # exercise the qw/kw path we test with nonzero values, and also with the zero init.
    qw_p_nz = jax.random.normal(ks[9], (1, D), jnp.float32)
    kw_p_nz = jax.random.normal(ks[10], (1, D), jnp.float32)

    base = {"wq_w": wq_w, "wq_b": wq_b,
            "wk_w": wk_w, "wk_b": wk_b,
            "wv_w": wv_w, "wv_b": wv_b}

    for qw_p, kw_p in [(qw_p_nz, kw_p_nz),
                       (jnp.zeros((1, D), jnp.float32), jnp.zeros((1, D), jnp.float32))]:
        params = dict(base, qw_p=qw_p, kw_p=kw_p)
        # Init-time packing (once per parameter set); per-call path is pallas_call only.
        consts, wparams = precompute_packed_params(params)
        out = jax.block_until_ready(
            model_forward(q, k, v, attn_mask, consts, wparams))
        ref = _reference(q, k, v, attn_mask, params)
        assert out.shape == (1, S, D)
        # Exact softmax divide; slack only covers the init-time algebraic fold's
        # float reassociation.
        assert jnp.allclose(out, ref, atol=1e-5, rtol=1e-5), "mismatch vs reference"

    print("KERNEL_OK")
</pallas_src>

<mosaic_0001>
module attributes {stable_mosaic.version = 11 : i64} {
  func.func @_attn_kernel(%arg0: memref<2xf32, #tpu.memory_space<smem>>, %arg1: memref<5x25xf32, #tpu.memory_space<vmem>>, %arg2: memref<5x25xf32, #tpu.memory_space<vmem>>, %arg3: memref<5x25xf32, #tpu.memory_space<vmem>>, %arg4: memref<28x25xf32, #tpu.memory_space<vmem>>, %arg5: memref<5x25xf32, #tpu.memory_space<vmem>>) attributes {dimension_semantics = [], scalar_prefetch = 0 : i64, scratch_operands = 0 : i64, tpu.core_type = #tpu.core_type<tc>} {
    %c0 = arith.constant 0 : index
    %c0_0 = arith.constant 0 : index
    %0 = vector.load %arg4[%c0, %c0_0] : memref<28x25xf32, #tpu.memory_space<vmem>>, vector<25x25xf32>
    %c25 = arith.constant 25 : index
    %c0_1 = arith.constant 0 : index
    %1 = vector.load %arg4[%c25, %c0_1] : memref<28x25xf32, #tpu.memory_space<vmem>>, vector<1x25xf32>
    %c26 = arith.constant 26 : index
    %c0_2 = arith.constant 0 : index
    %2 = vector.load %arg4[%c26, %c0_2] : memref<28x25xf32, #tpu.memory_space<vmem>>, vector<1x25xf32>
    %c27 = arith.constant 27 : index
    %c0_3 = arith.constant 0 : index
    %3 = vector.load %arg4[%c27, %c0_3] : memref<28x25xf32, #tpu.memory_space<vmem>>, vector<1x25xf32>
    %c0_4 = arith.constant 0 : index
    %c0_5 = arith.constant 0 : index
    %4 = vector.load %arg1[%c0_4, %c0_5] : memref<5x25xf32, #tpu.memory_space<vmem>>, vector<5x25xf32>
    %5 = vector.broadcast %2 : vector<1x25xf32> to vector<5x25xf32>
    %6 = arith.mulf %4, %5 : vector<5x25xf32>
    %cst = arith.constant dense<0.000000e+00> : vector<5xf32>
    %7 = vector.multi_reduction <add>, %6, %cst [1] : vector<5x25xf32> to vector<5xf32>
    %8 = vector.shape_cast %7 : vector<5xf32> to vector<5x1xf32>
    %c0_6 = arith.constant 0 : index
    %9 = memref.load %arg0[%c0_6] : memref<2xf32, #tpu.memory_space<smem>>
    %10 = vector.broadcast %9 : f32 to vector<5x1xf32>
    %11 = arith.addf %8, %10 : vector<5x1xf32>
    %c0_7 = arith.constant 0 : index
    %c0_8 = arith.constant 0 : index
    %12 = vector.load %arg2[%c0_7, %c0_8] : memref<5x25xf32, #tpu.memory_space<vmem>>, vector<5x25xf32>
    %13 = vector.broadcast %3 : vector<1x25xf32> to vector<5x25xf32>
    %14 = arith.mulf %12, %13 : vector<5x25xf32>
    %cst_9 = arith.constant dense<0.000000e+00> : vector<5xf32>
    %15 = vector.multi_reduction <add>, %14, %cst_9 [1] : vector<5x25xf32> to vector<5xf32>
    %16 = vector.shape_cast %15 : vector<5xf32> to vector<5x1xf32>
    %c1 = arith.constant 1 : index
    %17 = memref.load %arg0[%c1] : memref<2xf32, #tpu.memory_space<smem>>
    %18 = vector.broadcast %17 : f32 to vector<5x1xf32>
    %19 = arith.addf %16, %18 : vector<5x1xf32>
    %cst_10 = arith.constant dense<0.000000e+00> : vector<5x5xf32>
    %20 = tpu.matmul %11, %19, %cst_10 {dimension_numbers = #tpu.dot_dimension_numbers<[1], [1], [0], [0], [0, 0, 1, 0], [], []>} : vector<5x1xf32>, vector<5x1xf32>, vector<5x5xf32> -> vector<5x5xf32>
    %cst_11 = arith.constant dense<0xFF800000> : vector<5xf32>
    %21 = vector.multi_reduction <maximumf>, %20, %cst_11 [1] : vector<5x5xf32> to vector<5xf32>
    %22 = vector.shape_cast %21 : vector<5xf32> to vector<5x1xf32>
    %23 = vector.broadcast %22 : vector<5x1xf32> to vector<5x5xf32>
    %24 = arith.subf %20, %23 : vector<5x5xf32>
    %25 = math.exp %24 : vector<5x5xf32>
    %cst_12 = arith.constant dense<0.000000e+00> : vector<5xf32>
    %26 = vector.multi_reduction <add>, %25, %cst_12 [1] : vector<5x5xf32> to vector<5xf32>
    %27 = vector.shape_cast %26 : vector<5xf32> to vector<5x1xf32>
    %28 = vector.broadcast %27 : vector<5x1xf32> to vector<5x5xf32>
    %29 = arith.divf %25, %28 : vector<5x5xf32>
    %c0_13 = arith.constant 0 : index
    %c0_14 = arith.constant 0 : index
    %30 = vector.load %arg3[%c0_13, %c0_14] : memref<5x25xf32, #tpu.memory_space<vmem>>, vector<5x25xf32>
    %cst_15 = arith.constant dense<0.000000e+00> : vector<5x25xf32>
    %31 = tpu.matmul %30, %0, %cst_15 {dimension_numbers = #tpu.dot_dimension_numbers<[1], [0], [0], [1], [0, 0, 1, 1], [], []>} : vector<5x25xf32>, vector<25x25xf32>, vector<5x25xf32> -> vector<5x25xf32>
    %32 = vector.broadcast %1 : vector<1x25xf32> to vector<5x25xf32>
    %33 = arith.addf %31, %32 : vector<5x25xf32>
    %cst_16 = arith.constant dense<0.000000e+00> : vector<5x25xf32>
    %34 = tpu.matmul %29, %33, %cst_16 {dimension_numbers = #tpu.dot_dimension_numbers<[1], [0], [0], [1], [0, 0, 1, 1], [], []>} : vector<5x5xf32>, vector<5x25xf32>, vector<5x25xf32> -> vector<5x25xf32>
    %c0_17 = arith.constant 0 : index
    %c0_18 = arith.constant 0 : index
    %35 = vector.load %arg5[%c0_17, %c0_18] : memref<5x25xf32, #tpu.memory_space<vmem>>, vector<5x25xf32>
    tpu.vector_store %arg5[%c0_17, %c0_18], %34 {strides = array<i32>} : memref<5x25xf32, #tpu.memory_space<vmem>>, vector<5x25xf32>,
    return
  }
}

</mosaic_0001>

<llo_original>
// kernel: model_forward.1
$region0: #{model_forward.1}
  #allocation0 [shape = 'u32[]', space=smem, size = 0x4, offset = 0x4, fixed_abs, tag = 'smem constant byte address 0x4 - core index']
  #allocation1 [shape = 'u32[144,128]{1,0:T(1,128)}', space=vmem, size = 0x12000, scoped, tag = 'internal scratch']
  %s0 = inlined_call_operand.vmem [shape: f32[2], index: 0, kind: input, shape index: {}]
  %s1 = inlined_call_operand.vmem [shape: f32[5,25], index: 1, kind: input, shape index: {}]
  %s2 = inlined_call_operand.vmem [shape: f32[5,25], index: 2, kind: input, shape index: {}]
  %s3 = inlined_call_operand.vmem [shape: f32[5,25], index: 3, kind: input, shape index: {}]
  %s4 = inlined_call_operand.vmem [shape: f32[28,25], index: 4, kind: input, shape index: {}]
  %s5 = inlined_call_operand.vmem [shape: f32[5,25], index: 5, kind: output, shape index: {}]
  %s6 = sld [smem:[#allocation0]]
  $region34: #{model_forward.1} parent=0
    _
  %s8 = ssub.s32 1, %s6
  %s9 = scalar_select 0, %s8, %s6
  $region1: #{model_forward.1} parent=0
    #allocation2 [shape = 'u8[512]{0}', space=smem, size = 0x200, scoped, tag = 'input window, operand 0, single buffered']
    #allocation3 [shape = 's32[1]{0}', space=sflag, size = 0x4, scoped, tag = 'scoped memory for model_forward.1']
    %10 = vsyncpa [#allocation3], 0
    // Predicated region
    $region2: #{model_forward.1} parent=1 // pred_check
      _
    $region3: #{model_forward.1} parent=1 // pred_check_branch
      %12 = sbr.rel (0) target = $region5
    $region4: #{model_forward.1} parent=1 // pred_region
      %s14 = ssub.s32 16, 16
      %15 = vsyncadd [#allocation3], %s14
      %s17 = sshll.u32 %s0, 4
      %s18 = int_to_ptr.vmem [resolvable:$true] %s17
      %20 = dma.vmem_to_smem %s18, 16, [#allocation2], [#allocation3]
    $region5: #{model_forward.1} parent=1 // pred_fallthru
      _
    // Predicated region
    $region6: #{model_forward.1} parent=1 // pred_check
      _
    $region7: #{model_forward.1} parent=1 // pred_check_branch
      %22 = sbr.rel (0) target = $region9
    $region8: #{model_forward.1} parent=1 // pred_region
      _
    $region9: #{model_forward.1} parent=1 // pred_fallthru
      _
    // Predicated region
    $region10: #{model_forward.1} parent=1 // pred_check
      _
    $region11: #{model_forward.1} parent=1 // pred_check_branch
      %24 = sbr.rel (0) target = $region13
    $region12: #{model_forward.1} parent=1 // pred_region
      _
    $region13: #{model_forward.1} parent=1 // pred_fallthru
      _
    // Predicated region
    $region14: #{model_forward.1} parent=1 // pred_check
      _
    $region15: #{model_forward.1} parent=1 // pred_check_branch
      %26 = sbr.rel (0) target = $region17
    $region16: #{model_forward.1} parent=1 // pred_region
      _
    $region17: #{model_forward.1} parent=1 // pred_fallthru
      _
    // Predicated region
    $region18: #{model_forward.1} parent=1 // pred_check
      _
    $region19: #{model_forward.1} parent=1 // pred_check_branch
      %28 = sbr.rel (0) target = $region21
    $region20: #{model_forward.1} parent=1 // pred_region
      _
    $region21: #{model_forward.1} parent=1 // pred_fallthru
      _
    // Predicated region
    $region22: #{model_forward.1} parent=1 // pred_check
      _
    $region23: #{model_forward.1} parent=1 // pred_check_branch
      %30 = sbr.rel (0) target = $region25
    $region24: #{model_forward.1} parent=1 // pred_region
      %31 = dma.done [#allocation3], 16
    $region25: #{model_forward.1} parent=1 // pred_fallthru
      _
    %32 = sfence
    %v33 = vld [vmem:[%s4] sm:$0xff]
    %v34 = vld [vmem:[%s4 + $0x8] sm:$0xff]
    %v35 = vld [vmem:[%s4 + $0x10] sm:$0xff]
    %v36 = vld [vmem:[%s4 + $0x18] sm:$0x1]
    %v37 = vld [vmem:[%s4 + $0x19] sm:$0x1]
    %v38 = vld [vmem:[%s4 + $0x1a] sm:$0x1]
    %v39 = vld [vmem:[%s4 + $0x1b] sm:$0x1]
    %v40 = vld [vmem:[%s1] sm:$0x1f]
    %v41 = vlaneseq
    %v42 = vshrl.u32 %v41, 7
    %v43 = vsub.s32 0, %v42
    %v44 = vrot.slane %v38, %v43
    %v45 = vmul.f32 %v40, %v44
    %vm46 = vcmask 200704
    %v47 = vsel %vm46, %v45, 0.0
    %48 = vadd.xlane.f32.xlu0 %v47
    %v49 = vpop.xlane.xlu0 %48
    %s50 = sld [smem:[#allocation2]]
    %v51 = vstv %s50
    %v52 = vadd.f32 %v49, %v51
    %v53 = vld [vmem:[%s2] sm:$0x1f]
    %v54 = vlaneseq
    %v55 = vshrl.u32 %v54, 7
    %v56 = vsub.s32 0, %v55
    %v57 = vrot.slane %v39, %v56
    %v58 = vmul.f32 %v53, %v57
    %v59 = vsel %vm46, %v58, 0.0
    %60 = vadd.xlane.f32.xlu0 %v59
    %v61 = vpop.xlane.xlu0 %60
    %s62 = sld [smem:[#allocation2 + $0x1]]
    %v63 = vstv %s62
    %v64 = vadd.f32 %v61, %v63
    %vm65 = vcmask 7168
    %v67 = vsel %vm65, %v52, 0
    %v70 = vsel %vm65, %v64, 0
    %72 = vmatprep.subr.mxu0 0.0
    %73 = vmatpush1.xpose.msra.mxu0 0.0
    %74 = vmatprep.subr.mxu0 0.0
    %75 = vmatpush1.xpose.msra.mxu0 0.0
    %76 = vmatprep.subr.mxu0 0.0
    %77 = vmatpush1.xpose.msra.mxu0 0.0
    %78 = vmatprep.subr.mxu0 0.0
    %79 = vmatpush1.xpose.msra.mxu0 0.0
    %80 = vmatprep.subr.mxu0 0.0
    %81 = vmatpush1.xpose.msra.mxu0 0.0
    %82 = vmatprep.subr.mxu0 0.0
    %83 = vmatpush1.xpose.msra.mxu0 0.0
    %84 = vmatprep.subr.mxu0 0.0
    %85 = vmatpush1.xpose.msra.mxu0 0.0
    %86 = vmatprep.subr.mxu0 0.0
    %87 = vmatpush1.xpose.msra.mxu0 0.0
    %88 = vmatprep.subr.mxu0 0.0
    %89 = vmatpush1.xpose.msra.mxu0 0.0
    %90 = vmatprep.subr.mxu0 0.0
    %91 = vmatpush1.xpose.msra.mxu0 0.0
    %92 = vmatprep.subr.mxu0 0.0
    %93 = vmatpush1.xpose.msra.mxu0 0.0
    %94 = vmatprep.subr.mxu0 0.0
    %95 = vmatpush1.xpose.msra.mxu0 0.0
    %96 = vmatprep.subr.mxu0 0.0
    %97 = vmatpush1.xpose.msra.mxu0 0.0
    %98 = vmatprep.subr.mxu0 0.0
    %99 = vmatpush1.xpose.msra.mxu0 0.0
    %100 = vmatprep.subr.mxu0 0.0
    %101 = vmatpush1.xpose.msra.mxu0 0.0
    %102 = vmatprep.subr.mxu0 0.0
    %103 = vmatpush1.xpose.msra.mxu0 %v70
    %104 = vmatprep.subr.mxu0 0.0
    %105 = vmatpush2.xpose.msra.mxu0 0.0
    %106 = vmatprep.subr.mxu0 0.0
    %107 = vmatpush2.xpose.msra.mxu0 0.0
    %108 = vmatprep.subr.mxu0 0.0
    %109 = vmatpush2.xpose.msra.mxu0 0.0
    %110 = vmatprep.subr.mxu0 0.0
    %111 = vmatpush2.xpose.msra.mxu0 0.0
    %112 = vmatprep.subr.mxu0 0.0
    %113 = vmatpush2.xpose.msra.mxu0 0.0
    %114 = vmatprep.subr.mxu0 0.0
    %115 = vmatpush2.xpose.msra.mxu0 0.0
    %116 = vmatprep.subr.mxu0 0.0
    %117 = vmatpush2.xpose.msra.mxu0 0.0
    %118 = vmatprep.subr.mxu0 0.0
    %119 = vmatpush2.xpose.msra.mxu0 0.0
    %120 = vmatprep.subr.mxu0 0.0
    %121 = vmatpush2.xpose.msra.mxu0 0.0
    %122 = vmatprep.subr.mxu0 0.0
    %123 = vmatpush2.xpose.msra.mxu0 0.0
    %124 = vmatprep.subr.mxu0 0.0
    %125 = vmatpush2.xpose.msra.mxu0 0.0
    %126 = vmatprep.subr.mxu0 0.0
    %127 = vmatpush2.xpose.msra.mxu0 0.0
    %128 = vmatprep.subr.mxu0 0.0
    %129 = vmatpush2.xpose.msra.mxu0 0.0
    %130 = vmatprep.subr.mxu0 0.0
    %131 = vmatpush2.xpose.msra.mxu0 0.0
    %132 = vmatprep.subr.mxu0 0.0
    %133 = vmatpush2.xpose.msra.mxu0 0.0
    %134 = vmatprep.subr.mxu0 0.0
    %135 = vmatpush2.xpose.msra.mxu0 0.0
    %136 = vmatprep.mubr.f32.mxu0 0.0
    %137 = vmatmul.mubr.f32.gmra.mxu0 %v67
    %v138 = vpop.f32.mrf.mxu0
    %v139 = vadd.f32 0.0, %v138
    %v140 = vpop.f32.mrf.mxu0
    %141 = vdwg.mxu0
    %vm142 = vcmask 36864
    %v143 = vsel %vm142, %v139, -inf
    %144 = vmax.xlane.f32.xlu0 %v143
    %v145 = vpop.xlane.xlu0 %144
    %v146 = vsub.f32 %v139, %v145
    %v147 = vmul.f32 %v146, 1.442695
    %v148 = vpow.pop %v147
    %v149 = vsel %vm142, %v148, 0.0
    %150 = vadd.xlane.f32.xlu0 %v149
    %v151 = vpop.xlane.xlu0 %150
    %v152 = vrcp.pop %v151
    %v153 = vmul.f32 %v148, %v152
    %v154 = vld [vmem:[%s3] sm:$0x1f]
    %v155 = vlaneseq
    %v156 = vshrl.u32 %v155, 7
    %v157 = vsub.s32 0, %v156
    %v158 = vrot.slane %v37, %v157
    %vm159 = vcmask 203776
    %v161 = vsel %vm159, %v154, 0
    %vm163 = vcmask 1040384
    %v165 = vsel %vm163, %v36, 0
    %167 = vmatprep.subr.mxu0 0.0
    %168 = vmatpush1.msra.mxu0 0.0
    %169 = vmatprep.subr.mxu0 0.0
    %170 = vmatpush1.msra.mxu0 0.0
    %171 = vmatprep.subr.mxu0 0.0
    %172 = vmatpush1.msra.mxu0 0.0
    %173 = vmatprep.subr.mxu0 0.0
    %174 = vmatpush1.msra.mxu0 0.0
    %175 = vmatprep.subr.mxu0 0.0
    %176 = vmatpush1.msra.mxu0 0.0
    %177 = vmatprep.subr.mxu0 0.0
    %178 = vmatpush1.msra.mxu0 0.0
    %179 = vmatprep.subr.mxu0 0.0
    %180 = vmatpush1.msra.mxu0 0.0
    %181 = vmatprep.subr.mxu0 0.0
    %182 = vmatpush1.msra.mxu0 0.0
    %183 = vmatprep.subr.mxu0 0.0
    %184 = vmatpush1.msra.mxu0 0.0
    %185 = vmatprep.subr.mxu0 0.0
    %186 = vmatpush1.msra.mxu0 0.0
    %187 = vmatprep.subr.mxu0 0.0
    %188 = vmatpush1.msra.mxu0 0.0
    %189 = vmatprep.subr.mxu0 0.0
    %190 = vmatpush1.msra.mxu0 0.0
    %191 = vmatprep.subr.mxu0 0.0
    %192 = vmatpush1.msra.mxu0 %v165
    %193 = vmatprep.subr.mxu0 0.0
    %194 = vmatpush1.msra.mxu0 %v35
    %195 = vmatprep.subr.mxu0 0.0
    %196 = vmatpush1.msra.mxu0 %v34
    %197 = vmatprep.subr.mxu0 0.0
    %198 = vmatpush1.msra.mxu0 %v33
    %199 = vmatprep.subr.mxu0 0.0
    %200 = vmatpush2.msra.mxu0 0.0
    %201 = vmatprep.subr.mxu0 0.0
    %202 = vmatpush2.msra.mxu0 0.0
    %203 = vmatprep.subr.mxu0 0.0
    %204 = vmatpush2.msra.mxu0 0.0
    %205 = vmatprep.subr.mxu0 0.0
    %206 = vmatpush2.msra.mxu0 0.0
    %207 = vmatprep.subr.mxu0 0.0
    %208 = vmatpush2.msra.mxu0 0.0
    %209 = vmatprep.subr.mxu0 0.0
    %210 = vmatpush2.msra.mxu0 0.0
    %211 = vmatprep.subr.mxu0 0.0
    %212 = vmatpush2.msra.mxu0 0.0
    %213 = vmatprep.subr.mxu0 0.0
    %214 = vmatpush2.msra.mxu0 0.0
    %215 = vmatprep.subr.mxu0 0.0
    %216 = vmatpush2.msra.mxu0 0.0
    %217 = vmatprep.subr.mxu0 0.0
    %218 = vmatpush2.msra.mxu0 0.0
    %219 = vmatprep.subr.mxu0 0.0
    %220 = vmatpush2.msra.mxu0 0.0
    %221 = vmatprep.subr.mxu0 0.0
    %222 = vmatpush2.msra.mxu0 0.0
    %223 = vmatprep.subr.mxu0 0.0
    %224 = vmatpush2.msra.mxu0 0.0
    %225 = vmatprep.subr.mxu0 0.0
    %226 = vmatpush2.msra.mxu0 0.0
    %227 = vmatprep.subr.mxu0 0.0
    %228 = vmatpush2.msra.mxu0 0.0
    %229 = vmatprep.subr.mxu0 0.0
    %230 = vmatpush2.msra.mxu0 0.0
    %231 = vmatprep.mubr.f32.mxu0 0.0
    %232 = vmatmul.mubr.f32.gmra.mxu0 %v161
    %v233 = vpop.f32.mrf.mxu0
    %v234 = vadd.f32 %v158, %v233
    %v235 = vpop.f32.mrf.mxu0
    %236 = vdwg.mxu0
    %vm237 = vcmask 39936
    %v239 = vsel %vm237, %v153, 0
    %vm241 = vcmask 1044480
    %v243 = vsel %vm241, %v234, 0
    %245 = vmatprep.subr.mxu0 0.0
    %246 = vmatpush1.msra.mxu0 0.0
    %247 = vmatprep.subr.mxu0 0.0
    %248 = vmatpush1.msra.mxu0 0.0
    %249 = vmatprep.subr.mxu0 0.0
    %250 = vmatpush1.msra.mxu0 0.0
    %251 = vmatprep.subr.mxu0 0.0
    %252 = vmatpush1.msra.mxu0 0.0
    %253 = vmatprep.subr.mxu0 0.0
    %254 = vmatpush1.msra.mxu0 0.0
    %255 = vmatprep.subr.mxu0 0.0
    %256 = vmatpush1.msra.mxu0 0.0
    %257 = vmatprep.subr.mxu0 0.0
    %258 = vmatpush1.msra.mxu0 0.0
    %259 = vmatprep.subr.mxu0 0.0
    %260 = vmatpush1.msra.mxu0 0.0
    %261 = vmatprep.subr.mxu0 0.0
    %262 = vmatpush1.msra.mxu0 0.0
    %263 = vmatprep.subr.mxu0 0.0
    %264 = vmatpush1.msra.mxu0 0.0
    %265 = vmatprep.subr.mxu0 0.0
    %266 = vmatpush1.msra.mxu0 0.0
    %267 = vmatprep.subr.mxu0 0.0
    %268 = vmatpush1.msra.mxu0 0.0
    %269 = vmatprep.subr.mxu0 0.0
    %270 = vmatpush1.msra.mxu0 0.0
    %271 = vmatprep.subr.mxu0 0.0
    %272 = vmatpush1.msra.mxu0 0.0
    %273 = vmatprep.subr.mxu0 0.0
    %274 = vmatpush1.msra.mxu0 0.0
    %275 = vmatprep.subr.mxu0 0.0
    %276 = vmatpush1.msra.mxu0 %v243
    %277 = vmatprep.subr.mxu0 0.0
    %278 = vmatpush2.msra.mxu0 0.0
    %279 = vmatprep.subr.mxu0 0.0
    %280 = vmatpush2.msra.mxu0 0.0
    %281 = vmatprep.subr.mxu0 0.0
    %282 = vmatpush2.msra.mxu0 0.0
    %283 = vmatprep.subr.mxu0 0.0
    %284 = vmatpush2.msra.mxu0 0.0
    %285 = vmatprep.subr.mxu0 0.0
    %286 = vmatpush2.msra.mxu0 0.0
    %287 = vmatprep.subr.mxu0 0.0
    %288 = vmatpush2.msra.mxu0 0.0
    %289 = vmatprep.subr.mxu0 0.0
    %290 = vmatpush2.msra.mxu0 0.0
    %291 = vmatprep.subr.mxu0 0.0
    %292 = vmatpush2.msra.mxu0 0.0
    %293 = vmatprep.subr.mxu0 0.0
    %294 = vmatpush2.msra.mxu0 0.0
    %295 = vmatprep.subr.mxu0 0.0
    %296 = vmatpush2.msra.mxu0 0.0
    %297 = vmatprep.subr.mxu0 0.0
    %298 = vmatpush2.msra.mxu0 0.0
    %299 = vmatprep.subr.mxu0 0.0
    %300 = vmatpush2.msra.mxu0 0.0
    %301 = vmatprep.subr.mxu0 0.0
    %302 = vmatpush2.msra.mxu0 0.0
    %303 = vmatprep.subr.mxu0 0.0
    %304 = vmatpush2.msra.mxu0 0.0
    %305 = vmatprep.subr.mxu0 0.0
    %306 = vmatpush2.msra.mxu0 0.0
    %307 = vmatprep.subr.mxu0 0.0
    %308 = vmatpush2.msra.mxu0 0.0
    %309 = vmatprep.mubr.f32.mxu0 0.0
    %310 = vmatmul.mubr.f32.gmra.mxu0 %v239
    %v311 = vpop.f32.mrf.mxu0
    %v312 = vadd.f32 0.0, %v311
    %v313 = vpop.f32.mrf.mxu0
    %314 = vdwg.mxu0
    %315 = vst.msk [vmem:[%s5] sm:$0x1f] %vm46, %v312
    // Predicated region
    $region26: #{model_forward.1} parent=1 // pred_check
      _
    $region27: #{model_forward.1} parent=1 // pred_check_branch
      %317 = sbr.rel (0) target = $region29
    $region28: #{model_forward.1} parent=1 // pred_region
      _
    $region29: #{model_forward.1} parent=1 // pred_fallthru
      _
    // Predicated region
    $region30: #{model_forward.1} parent=1 // pred_check
      _
    $region31: #{model_forward.1} parent=1 // pred_check_branch
      %319 = sbr.rel (0) target = $region33
    $region32: #{model_forward.1} parent=1 // pred_region
      _
    $region33: #{model_forward.1} parent=1 // pred_fallthru
      _
    %320 = vsyncpa [#allocation3], 1

</llo_original>
